<compile_context>
chip_gen: v7x
topology: tpu7x:2x2x1
jax: 0.10.0
libtpu: 0.0.40
codegen_flags: <defaults>
</compile_context>

<pallas_src>
import jax
import jax.numpy as jnp
from jax.experimental import pallas as pl
from jax.experimental.pallas import tpu as pltpu


def _round_up(n, m):
    return ((n + m - 1) // m) * m


# ----------------------------- kernels --------------------------------------

def _resnet_kernel_full(x_ref, w_ref, b_ref, o_ref):
    """Output tile spans the full (padded) feature dim: residual == x tile."""
    xf = x_ref[...].astype(jnp.float32)                    # (tm, Dp)  Swish in f32
    act = (xf * jax.nn.sigmoid(xf)).astype(w_ref.dtype)    # MXU input in native dtype
    res = jnp.dot(act, w_ref[...], preferred_element_type=jnp.float32)
    res = res + b_ref[...].astype(jnp.float32)             # (1, Dp) broadcasts
    o_ref[...] = (xf + res).astype(o_ref.dtype)


def _resnet_kernel_ntiled(x_ref, xres_ref, w_ref, b_ref, o_ref):
    """N-tiled variant: x_ref is the full-K row tile (matmul input),
    xres_ref is the (tm, tn) slice of x matching this output tile."""
    xf = x_ref[...].astype(jnp.float32)                    # (tm, Dp)
    act = (xf * jax.nn.sigmoid(xf)).astype(w_ref.dtype)
    res = jnp.dot(act, w_ref[...], preferred_element_type=jnp.float32)  # (tm, tn)
    res = res + b_ref[...].astype(jnp.float32)
    o_ref[...] = (xres_ref[...].astype(jnp.float32) + res).astype(o_ref.dtype)


# ----------------------------- wrapper ---------------------------------------

def resnet_block(x, w, b, *, tm=None, tn=None):
    """out = x + swish(x) @ w.T + b.

    x: [B, D]; w: [hidden, input] = [D, D] (PyTorch nn.Linear layout); b: [D].
    """
    B, D = x.shape
    assert w.shape == (D, D), "residual add requires hidden_size == input_size"
    assert b.shape == (D,)
    dtype = x.dtype
    itemsize = jnp.dtype(dtype).itemsize

    # ---- one-time layout prep (plain XLA ops, outside the kernel) ----
    w_t = w.T                             # [in, out]: MXU-ready, no in-kernel .T
    Dp = max(_round_up(D, 128), 128)      # lane-dense feature dim

    # Row (batch) tile: 128-aligned with >= 2 grid steps when the batch allows.
    if tm is None:
        if B >= 2 * 128:
            tm = 128
            for cand in (1024, 512, 256):
                if B >= 2 * cand and cand * Dp * 4 <= 4 * 1024 * 1024:
                    tm = cand
                    break
        else:
            tm = _round_up(max(B, 8), 8)
    Bp = _round_up(B, tm)
    nb = Bp // tm

    # Output-feature tile: bound the resident weight slice (v7x: 64 MiB VMEM).
    if tn is None:
        if Dp * Dp * itemsize <= 8 * 1024 * 1024:
            tn = Dp
        else:
            tn = Dp
            for cand in (512, 256, 128):
                if Dp % cand == 0:
                    tn = cand
                    break
    assert Dp % tn == 0 and tn % 128 == 0
    nn = Dp // tn

    # ---- zero padding (exact: swish(0) = 0 contributes nothing; padded output
    #      columns/rows are sliced off) ----
    x_p = x if (Bp == B and Dp == D) else jnp.pad(x, ((0, Bp - B), (0, Dp - D)))
    w_p = w_t if Dp == D else jnp.pad(w_t, ((0, Dp - D), (0, Dp - D)))
    b_p = (b if Dp == D else jnp.pad(b, (0, Dp - D))).reshape(1, Dp)

    cost = pl.CostEstimate(
        flops=2 * Bp * Dp * Dp + 4 * Bp * Dp,
        transcendentals=Bp * Dp,
        bytes_accessed=(2 * Bp * Dp + Dp * Dp + Dp) * itemsize,
    )
    cparams = pltpu.CompilerParams(
        dimension_semantics=("parallel", "parallel"))

    if nn == 1:
        kernel = _resnet_kernel_full
        operands = (x_p, w_p, b_p)
        in_specs = [
            pl.BlockSpec((tm, Dp), lambda i, j: (i, 0)),   # x row tile
            pl.BlockSpec((Dp, Dp), lambda i, j: (0, 0)),   # weight (grid-invariant)
            pl.BlockSpec((1, Dp), lambda i, j: (0, 0)),    # bias (grid-invariant)
        ]
        out_spec = pl.BlockSpec((tm, Dp), lambda i, j: (i, 0))
    else:
        kernel = _resnet_kernel_ntiled
        operands = (x_p, x_p, w_p, b_p)
        in_specs = [
            pl.BlockSpec((tm, Dp), lambda i, j: (i, 0)),   # full-K x row tile
            pl.BlockSpec((tm, tn), lambda i, j: (i, j)),   # residual slice of x
            pl.BlockSpec((Dp, tn), lambda i, j: (0, j)),   # weight column slice
            pl.BlockSpec((1, tn), lambda i, j: (0, j)),    # bias slice
        ]
        out_spec = pl.BlockSpec((tm, tn), lambda i, j: (i, j))

    out_p = pl.pallas_call(
        kernel,
        out_shape=jax.ShapeDtypeStruct((Bp, Dp), dtype),
        grid_spec=pltpu.PrefetchScalarGridSpec(
            num_scalar_prefetch=0,
            grid=(nb, nn),
            in_specs=in_specs,
            out_specs=out_spec,
        ),
        compiler_params=cparams,
        cost_estimate=cost,
    )(*operands)

    return out_p[:B, :D] if (Bp != B or Dp != D) else out_p


# ------------------------------- demo / check --------------------------------

if __name__ == "__main__":
    key = jax.random.PRNGKey(0)

    def reference(x, w, b):
        xf = x.astype(jnp.float32)
        act = xf * jax.nn.sigmoid(xf)
        return xf + act @ w.astype(jnp.float32).T + b.astype(jnp.float32)

    configs = [
        # (batch, features, dtype, forced tn, tolerance)
        (256, 128, jnp.float32,  None, 1e-4),   # lane-dense, 2 batch tiles
        (8,   32,  jnp.float32,  None, 1e-4),   # padding path (D=32 -> 128)
        (64,  256, jnp.float32,  128,  1e-4),   # forced N-tiling path (nn=2)
        (256, 128, jnp.bfloat16, None, 5e-2),   # bf16 path (native-dtype MXU)
    ]

    for idx, (B, D, dt, tn, tol) in enumerate(configs):
        kx, kw, kb, key = jax.random.split(key, 4)
        x = jax.random.normal(kx, (B, D), dtype=jnp.float32)
        w = jax.random.normal(kw, (D, D), dtype=jnp.float32) * (1.0 / jnp.sqrt(D))
        b = jax.random.normal(kb, (D,), dtype=jnp.float32) * 0.1

        xd, wd, bd = x.astype(dt), w.astype(dt), b.astype(dt)
        out = resnet_block(xd, wd, bd, tn=tn)
        out = jax.block_until_ready(out)

        ref = reference(xd, wd, bd)
        assert out.shape == (B, D) and out.dtype == jnp.dtype(dt)
        assert jnp.allclose(out.astype(jnp.float32), ref, atol=tol, rtol=tol), \
            f"mismatch vs reference in config {idx} (B={B}, D={D}, dtype={dt})"

    print("KERNEL_OK")
</pallas_src>

<mosaic_0001>
module attributes {stable_mosaic.version = 11 : i64} {
  func.func @_resnet_kernel_full(%arg0: i32, %arg1: i32, %arg2: memref<128x128xf32, #tpu.memory_space<vmem>>, %arg3: memref<128x128xf32, #tpu.memory_space<vmem>>, %arg4: memref<1x128xf32, #tpu.memory_space<vmem>>, %arg5: memref<128x128xf32, #tpu.memory_space<vmem>>) attributes {dimension_semantics = [#tpu.dimension_semantics<parallel>, #tpu.dimension_semantics<parallel>], iteration_bounds = array<i64: 2, 1>, scalar_prefetch = 0 : i64, scratch_operands = 0 : i64, tpu.core_type = #tpu.core_type<tc>, window_params = [{transform_indices = @transform_0, window_bounds = array<i64: 128, 128>}, {pipeline_mode = #tpu.pipeline_mode<synchronous>, transform_indices = @transform_1, window_bounds = array<i64: 128, 128>}, {pipeline_mode = #tpu.pipeline_mode<synchronous>, transform_indices = @transform_2, window_bounds = array<i64: 1, 128>}, {transform_indices = @transform_3, window_bounds = array<i64: 128, 128>}]} {
    %c0 = arith.constant 0 : index
    %c0_0 = arith.constant 0 : index
    %0 = vector.load %arg2[%c0, %c0_0] : memref<128x128xf32, #tpu.memory_space<vmem>>, vector<128x128xf32>
    %1 = arith.negf %0 : vector<128x128xf32>
    %2 = math.exp %1 : vector<128x128xf32>
    %cst = arith.constant 1.000000e+00 : f32
    %3 = vector.broadcast %cst : f32 to vector<128x128xf32>
    %4 = arith.addf %3, %2 : vector<128x128xf32>
    %5 = arith.divf %3, %4 : vector<128x128xf32>
    %6 = arith.mulf %0, %5 : vector<128x128xf32>
    %c0_1 = arith.constant 0 : index
    %c0_2 = arith.constant 0 : index
    %7 = vector.load %arg3[%c0_1, %c0_2] : memref<128x128xf32, #tpu.memory_space<vmem>>, vector<128x128xf32>
    %cst_3 = arith.constant dense<0.000000e+00> : vector<128x128xf32>
    %8 = tpu.matmul %6, %7, %cst_3 {dimension_numbers = #tpu.dot_dimension_numbers<[1], [0], [0], [1], [0, 0, 1, 1], [], []>} : vector<128x128xf32>, vector<128x128xf32>, vector<128x128xf32> -> vector<128x128xf32>
    %c0_4 = arith.constant 0 : index
    %c0_5 = arith.constant 0 : index
    %9 = vector.load %arg4[%c0_4, %c0_5] : memref<1x128xf32, #tpu.memory_space<vmem>>, vector<1x128xf32>
    %10 = vector.broadcast %9 : vector<1x128xf32> to vector<128x128xf32>
    %11 = arith.addf %8, %10 : vector<128x128xf32>
    %12 = arith.addf %0, %11 : vector<128x128xf32>
    %c0_6 = arith.constant 0 : index
    %c0_7 = arith.constant 0 : index
    %13 = vector.load %arg5[%c0_6, %c0_7] : memref<128x128xf32, #tpu.memory_space<vmem>>, vector<128x128xf32>
    tpu.vector_store %arg5[%c0_6, %c0_7], %12 {strides = array<i32>} : memref<128x128xf32, #tpu.memory_space<vmem>>, vector<128x128xf32>,
    return
  }
  func.func @transform_0(%arg0: i32, %arg1: i32) -> (i32, i32) {
    %c0_i32 = arith.constant 0 : i32
    %c0_i32_0 = arith.constant 0 : i32
    return %arg0, %c0_i32 : i32, i32
  }
  func.func @transform_1(%arg0: i32, %arg1: i32) -> (i32, i32) {
    %c0_i32 = arith.constant 0 : i32
    %c0_i32_0 = arith.constant 0 : i32
    %c0_i32_1 = arith.constant 0 : i32
    return %c0_i32, %c0_i32_0 : i32, i32
  }
  func.func @transform_2(%arg0: i32, %arg1: i32) -> (i32, i32) {
    %c0_i32 = arith.constant 0 : i32
    %c0_i32_0 = arith.constant 0 : i32
    %c0_i32_1 = arith.constant 0 : i32
    return %c0_i32, %c0_i32_0 : i32, i32
  }
  func.func @transform_3(%arg0: i32, %arg1: i32) -> (i32, i32) {
    %c0_i32 = arith.constant 0 : i32
    %c0_i32_0 = arith.constant 0 : i32
    return %arg0, %c0_i32 : i32, i32
  }
}

</mosaic_0001>

<llo_original>
// kernel: tpu_custom_call.1
$region0: #{tpu_custom_call.1}
  #allocation0 [shape = 'u32[]', space=smem, size = 0x4, offset = 0x4, fixed_abs, tag = 'smem constant byte address 0x4 - core index']
  #allocation1 [shape = 'u32[144,128]{1,0:T(1,128)}', space=vmem, size = 0x12000, scoped, tag = 'internal scratch']
  %s0 = inlined_call_operand.hbm [shape: f32[256,128], index: 0, kind: input, shape index: {}]
  %s1 = inlined_call_operand.hbm [shape: f32[128,128], index: 1, kind: input, shape index: {}]
  %s2 = inlined_call_operand.vmem [shape: f32[1,128], index: 2, kind: input, shape index: {}]
  %s3 = inlined_call_operand.hbm [shape: f32[256,128], index: 3, kind: output, shape index: {}]
  %s4 = sld [smem:[#allocation0]]
  $region53: #{tpu_custom_call.1} parent=0
    _
  %s6 = ssub.s32 1, %s4
  %s7 = scalar_select 0, %s6, %s4
  $region1: #{tpu_custom_call.1} parent=0
    #allocation2 [shape = 'u8[131072]{0}', space=vmem, size = 0x20000, scoped, tag = 'input window, operand 0']
    #allocation3 [shape = 's32[2]{0}', space=sflag, size = 0x8, scoped, tag = 'scoped memory for tpu_custom_call.1']
    #allocation4 [shape = 's32[2]{0}', space=sflag, size = 0x8, scoped, tag = 'scoped memory for tpu_custom_call.1']
    #allocation5 [shape = 'u8[65536]{0}', space=vmem, size = 0x10000, scoped, tag = 'input window, operand 1, single buffered']
    #allocation6 [shape = 's32[1]{0}', space=sflag, size = 0x4, scoped, tag = 'scoped memory for tpu_custom_call.1']
    #allocation7 [shape = 'u8[131072]{0}', space=vmem, size = 0x20000, scoped, tag = 'output window, operand 0']
    %8 = vsyncpa [#allocation3], 0
    %s9 = scalar_lea.sflag [#allocation3], 1
    %10 = vsyncpa %s9, 0
    %11 = vsyncpa [#allocation6], 0
    %12 = vsyncpa [#allocation4], 0
    %s13 = scalar_lea.sflag [#allocation4], 1
    %14 = vsyncpa %s13, 0
    loop: start=0, step=1, limit=4
    $region2: #{tpu_custom_call.1} parent=1 // loop_pre_header
      _
    $region3: #{tpu_custom_call.1} parent=1 // loop_header
      %s16 = sphi 0, %s20
      %p17 = scmp.ge.s32.totalorder %s16, 4
      %s23 = sphi 0, %s35
      %s24 = sphi 0, %s31
      %s25 = sphi 0, %s23
      %s26 = sphi 0, %s24
      %s27 = sphi 0, %s25
      %s28 = sphi 0, %s26
      %s38 = sphi 0, %s40
      %s41 = sphi 0, %s38
      %s42 = sphi 0, %s41
      %s58 = sphi 0, %s42
      %s62 = sphi 0, %s62
      %s64 = sphi 0, %s62
      %s65 = sphi 0, %s64
      %s79 = sphi 0, %s65
      %s83 = sphi 0, %s83
      %s85 = sphi 0, %s83
      %s86 = sphi 0, %s85
      %s100 = sphi 0, %s86
      %s106 = sphi 0, %s108
      %s109 = sphi 0, %s106
      %s110 = sphi 0, %s109
      %s126 = sphi 0, %s110
    $region4: #{tpu_custom_call.1} parent=1 // loop_header_branch
      %19 = sbr.rel (%p17) target = $region8
    $region5: #{tpu_custom_call.1} parent=1 // loop_body
      %s21 = ssub.s32 %s16, 1
      %s22 = ssub.s32 %s16, 2
      %s29 = sadd.s32 1, %s24
      %p30 = scmp.ge.s32.totalorder %s29, 1
      %s31 = scalar_select %p30, 0, %s29
      %s32 = sadd.s32 1, %s23
      %s33 = scalar_select %p30, %s32, %s23
      %p34 = scmp.ge.s32.totalorder %s33, 2
      %s35 = scalar_select %p34, 0, %s33
      %s36 = ssub.s32 %s23, %s35
      %p37 = scmp.eq.s32.totalorder %s36, 0
      %s39 = sadd.s32 %s38, 1
      %s40 = scalar_select %p37, %s38, %s39
      %p43 = pneg %p37
      %p44 = scmp.eq.s32.totalorder %s16, 1
      %p45 = por %p43, %p44
      %p46 = scmp.ne.s32.totalorder %s38, %s41
      %p47 = scmp.eq.s32.totalorder %s16, 0
      %p48 = por %p46, %p47
      %p49 = scmp.ne.s32.totalorder %s38, %s41
      %p50 = scmp.eq.s32.totalorder %s21, 1
      %p51 = por %p49, %p50
      %p52 = scmp.ne.s32.totalorder %s41, %s42
      %p53 = scmp.eq.s32.totalorder %s21, 0
      %p54 = por %p52, %p53
      %p55 = scmp.ne.s32.totalorder %s41, %s42
      %p56 = scmp.eq.s32.totalorder %s22, 1
      %p57 = por %p55, %p56
      %p59 = scmp.ne.s32.totalorder %s42, %s58
      %p60 = scmp.eq.s32.totalorder %s22, 0
      %p61 = por %p59, %p60
      %s63 = sadd.s32 %s62, 1
      %p66 = scmp.eq.s32.totalorder %s16, 1
      %p67 = scmp.ne.s32.totalorder %s62, %s64
      %p68 = scmp.eq.s32.totalorder %s16, 0
      %p69 = por %p67, %p68
      %p70 = scmp.ne.s32.totalorder %s62, %s64
      %p71 = scmp.eq.s32.totalorder %s21, 1
      %p72 = por %p70, %p71
      %p73 = scmp.ne.s32.totalorder %s64, %s65
      %p74 = scmp.eq.s32.totalorder %s21, 0
      %p75 = por %p73, %p74
      %p76 = scmp.ne.s32.totalorder %s64, %s65
      %p77 = scmp.eq.s32.totalorder %s22, 1
      %p78 = por %p76, %p77
      %p80 = scmp.ne.s32.totalorder %s65, %s79
      %p81 = scmp.eq.s32.totalorder %s22, 0
      %p82 = por %p80, %p81
      %s84 = sadd.s32 %s83, 1
      %p87 = scmp.eq.s32.totalorder %s16, 1
      %p88 = scmp.ne.s32.totalorder %s83, %s85
      %p89 = scmp.eq.s32.totalorder %s16, 0
      %p90 = por %p88, %p89
      %p91 = scmp.ne.s32.totalorder %s83, %s85
      %p92 = scmp.eq.s32.totalorder %s21, 1
      %p93 = por %p91, %p92
      %p94 = scmp.ne.s32.totalorder %s85, %s86
      %p95 = scmp.eq.s32.totalorder %s21, 0
      %p96 = por %p94, %p95
      %p97 = scmp.ne.s32.totalorder %s85, %s86
      %p98 = scmp.eq.s32.totalorder %s22, 1
      %p99 = por %p97, %p98
      %p101 = scmp.ne.s32.totalorder %s86, %s100
      %p102 = scmp.eq.s32.totalorder %s22, 0
      %p103 = por %p101, %p102
      %s104 = ssub.s32 %s23, %s35
      %p105 = scmp.eq.s32.totalorder %s104, 0
      %s107 = sadd.s32 %s106, 1
      %s108 = scalar_select %p105, %s106, %s107
      %p111 = pneg %p105
      %p112 = scmp.eq.s32.totalorder %s16, 1
      %p113 = por %p111, %p112
      %p114 = scmp.ne.s32.totalorder %s106, %s109
      %p115 = scmp.eq.s32.totalorder %s16, 0
      %p116 = por %p114, %p115
      %p117 = scmp.ne.s32.totalorder %s106, %s109
      %p118 = scmp.eq.s32.totalorder %s21, 1
      %p119 = por %p117, %p118
      %p120 = scmp.ne.s32.totalorder %s109, %s110
      %p121 = scmp.eq.s32.totalorder %s21, 0
      %p122 = por %p120, %p121
      %p123 = scmp.ne.s32.totalorder %s109, %s110
      %p124 = scmp.eq.s32.totalorder %s22, 1
      %p125 = por %p123, %p124
      %p127 = scmp.ne.s32.totalorder %s110, %s126
      %p128 = scmp.eq.s32.totalorder %s22, 0
      %p129 = por %p127, %p128
      %p130 = scmp.le.s32.totalorder 1, %s16
      %p131 = scmp.lt.s32.totalorder %s16, 3
      %p132 = pnand %p130, %p131
      %p133 = pneg %p132
      // Predicated region
      $region9: #{tpu_custom_call.1} parent=5 // pred_check
        _
      $region10: #{tpu_custom_call.1} parent=5 // pred_check_branch
        %135 = sbr.rel (%p132) target = $region12
      $region11: #{tpu_custom_call.1} parent=5 // pred_region
        %s136 = ssub.s32 %s16, 1
        // Predicated region
        $region13: #{tpu_custom_call.1} parent=11 // pred_check
          %p137 = pneg %p75
        $region14: #{tpu_custom_call.1} parent=11 // pred_check_branch
          %139 = sbr.rel (%p137) target = $region16
        $region15: #{tpu_custom_call.1} parent=11 // pred_region
          %s141 = ssub.s32 2048, 2048
          %142 = vsyncadd [#allocation6], %s141
          %s143 = sshll.u32 [#allocation5], 4
          %s144 = int_to_ptr.vmem [resolvable:$true] %s143
          %149 = dma.hbm_to_vmem [thread:$0]  %s1, 2048, %s144, [#allocation6], 128, 128, 8
        $region16: #{tpu_custom_call.1} parent=11 // pred_fallthru
          _
        // Predicated region
        $region17: #{tpu_custom_call.1} parent=11 // pred_check
          %p150 = pneg %p96
        $region18: #{tpu_custom_call.1} parent=11 // pred_check_branch
          %152 = sbr.rel (%p150) target = $region20
        $region19: #{tpu_custom_call.1} parent=11 // pred_region
          _
        $region20: #{tpu_custom_call.1} parent=11 // pred_fallthru
          _
      $region12: #{tpu_custom_call.1} parent=5 // pred_fallthru
        _
      %p153 = scmp.lt.s32.totalorder %s16, 2
      // Predicated region
      $region21: #{tpu_custom_call.1} parent=5 // pred_check
        %p154 = pneg %p153
      $region22: #{tpu_custom_call.1} parent=5 // pred_check_branch
        %156 = sbr.rel (%p154) target = $region24
      $region23: #{tpu_custom_call.1} parent=5 // pred_region
        // Predicated region
        $region25: #{tpu_custom_call.1} parent=23 // pred_check
          %p157 = pneg %p48
        $region26: #{tpu_custom_call.1} parent=23 // pred_check_branch
          %159 = sbr.rel (%p157) target = $region28
        $region27: #{tpu_custom_call.1} parent=23 // pred_region
          %s160 = sand.u32 %s38, 1
          %s161 = scalar_lea.sflag [#allocation3], %s160
          %s162 = sand.u32 %s38, 1
          %s163 = smul.addr %s162, 128
          %s164 = scalar_lea.vmem [#allocation2], %s163
          %s165 = smul.u32 16, %s23
          %s167 = ssub.s32 2048, 2048
          %168 = vsyncadd %s161, %s167
          %s169 = smul.addr %s165, 128
          %s170 = scalar_lea.hbm %s0, %s169
          %s171 = sshll.u32 %s164, 4
          %s172 = int_to_ptr.vmem [resolvable:$true] %s171
          %177 = dma.hbm_to_vmem [thread:$0]  %s170, 2048, %s172, %s161, 128, 128, 8
        $region28: #{tpu_custom_call.1} parent=23 // pred_fallthru
          _
      $region24: #{tpu_custom_call.1} parent=5 // pred_fallthru
        _
      %p178 = scmp.le.s32.totalorder 1, %s16
      %p179 = scmp.lt.s32.totalorder %s16, 3
      %p180 = pnand %p178, %p179
      %p181 = pneg %p180
      // Predicated region
      $region29: #{tpu_custom_call.1} parent=5 // pred_check
        _
      $region30: #{tpu_custom_call.1} parent=5 // pred_check_branch
        %183 = sbr.rel (%p180) target = $region32
      $region31: #{tpu_custom_call.1} parent=5 // pred_region
        %s184 = ssub.s32 %s16, 1
        %s185 = sand.u32 %s41, 1
        %s186 = scalar_lea.sflag [#allocation3], %s185
        %s187 = sand.u32 %s41, 1
        %s188 = smul.addr %s187, 128
        %s189 = scalar_lea.vmem [#allocation2], %s188
        // Predicated region
        $region33: #{tpu_custom_call.1} parent=31 // pred_check
          %p190 = pneg %p54
        $region34: #{tpu_custom_call.1} parent=31 // pred_check_branch
          %192 = sbr.rel (%p190) target = $region36
        $region35: #{tpu_custom_call.1} parent=31 // pred_region
          %193 = dma.done %s186, 2048
        $region36: #{tpu_custom_call.1} parent=31 // pred_fallthru
          _
        // Predicated region
        $region37: #{tpu_custom_call.1} parent=31 // pred_check
          %p194 = pneg %p75
        $region38: #{tpu_custom_call.1} parent=31 // pred_check_branch
          %196 = sbr.rel (%p194) target = $region40
        $region39: #{tpu_custom_call.1} parent=31 // pred_region
          %197 = dma.done [#allocation6], 2048
        $region40: #{tpu_custom_call.1} parent=31 // pred_fallthru
          _
        %s198 = sand.u32 %s41, 1
        %s199 = scalar_lea.sflag [#allocation3], %s198
        %s200 = sand.u32 %s41, 1
        %s201 = smul.addr %s200, 128
        %s202 = scalar_lea.vmem [#allocation2], %s201
        %p203 = pneg %p54
        %p204 = pneg %p51
        %p205 = pneg %p75
        %p206 = pneg %p72
        %p207 = pneg %p96
        %p208 = pneg %p93
        %p209 = pneg %p122
        %p210 = pneg %p119
        %s211 = sand.u32 %s109, 1
        %s212 = scalar_lea.sflag [#allocation4], %s211
        %s213 = sand.u32 %s109, 1
        %s214 = smul.addr %s213, 128
        %s215 = scalar_lea.vmem [#allocation7], %s214
        %s216 = smul.u32 16, %s25
        %s217 = smul.u32 16, %s25
        %v218 = vld [vmem:[%s189] sm:$0xff]
        %v219 = vld [vmem:[%s189 + $0x8] sm:$0xff]
        %v220 = vld [vmem:[%s189 + $0x10] sm:$0xff]
        %v221 = vld [vmem:[%s189 + $0x18] sm:$0xff]
        %v222 = vld [vmem:[%s189 + $0x20] sm:$0xff]
        %v223 = vld [vmem:[%s189 + $0x28] sm:$0xff]
        %v224 = vld [vmem:[%s189 + $0x30] sm:$0xff]
        %v225 = vld [vmem:[%s189 + $0x38] sm:$0xff]
        %v226 = vld [vmem:[%s189 + $0x40] sm:$0xff]
        %v227 = vld [vmem:[%s189 + $0x48] sm:$0xff]
        %v228 = vld [vmem:[%s189 + $0x50] sm:$0xff]
        %v229 = vld [vmem:[%s189 + $0x58] sm:$0xff]
        %v230 = vld [vmem:[%s189 + $0x60] sm:$0xff]
        %v231 = vld [vmem:[%s189 + $0x68] sm:$0xff]
        %v232 = vld [vmem:[%s189 + $0x70] sm:$0xff]
        %v233 = vld [vmem:[%s189 + $0x78] sm:$0xff]
        %v234 = vxor.u32 %v218, 2147483648
        %v235 = vxor.u32 %v219, 2147483648
        %v236 = vxor.u32 %v220, 2147483648
        %v237 = vxor.u32 %v221, 2147483648
        %v238 = vxor.u32 %v222, 2147483648
        %v239 = vxor.u32 %v223, 2147483648
        %v240 = vxor.u32 %v224, 2147483648
        %v241 = vxor.u32 %v225, 2147483648
        %v242 = vxor.u32 %v226, 2147483648
        %v243 = vxor.u32 %v227, 2147483648
        %v244 = vxor.u32 %v228, 2147483648
        %v245 = vxor.u32 %v229, 2147483648
        %v246 = vxor.u32 %v230, 2147483648
        %v247 = vxor.u32 %v231, 2147483648
        %v248 = vxor.u32 %v232, 2147483648
        %v249 = vxor.u32 %v233, 2147483648
        %v250 = vmul.f32 %v234, 1.442695
        %v251 = vpow.pop %v250
        %v252 = vmul.f32 %v235, 1.442695
        %v253 = vpow.pop %v252
        %v254 = vmul.f32 %v236, 1.442695
        %v255 = vpow.pop %v254
        %v256 = vmul.f32 %v237, 1.442695
        %v257 = vpow.pop %v256
        %v258 = vmul.f32 %v238, 1.442695
        %v259 = vpow.pop %v258
        %v260 = vmul.f32 %v239, 1.442695
        %v261 = vpow.pop %v260
        %v262 = vmul.f32 %v240, 1.442695
        %v263 = vpow.pop %v262
        %v264 = vmul.f32 %v241, 1.442695
        %v265 = vpow.pop %v264
        %v266 = vmul.f32 %v242, 1.442695
        %v267 = vpow.pop %v266
        %v268 = vmul.f32 %v243, 1.442695
        %v269 = vpow.pop %v268
        %v270 = vmul.f32 %v244, 1.442695
        %v271 = vpow.pop %v270
        %v272 = vmul.f32 %v245, 1.442695
        %v273 = vpow.pop %v272
        %v274 = vmul.f32 %v246, 1.442695
        %v275 = vpow.pop %v274
        %v276 = vmul.f32 %v247, 1.442695
        %v277 = vpow.pop %v276
        %v278 = vmul.f32 %v248, 1.442695
        %v279 = vpow.pop %v278
        %v280 = vmul.f32 %v249, 1.442695
        %v281 = vpow.pop %v280
        %v282 = vadd.f32 %v251, 1.0
        %v283 = vadd.f32 %v253, 1.0
        %v284 = vadd.f32 %v255, 1.0
        %v285 = vadd.f32 %v257, 1.0
        %v286 = vadd.f32 %v259, 1.0
        %v287 = vadd.f32 %v261, 1.0
        %v288 = vadd.f32 %v263, 1.0
        %v289 = vadd.f32 %v265, 1.0
        %v290 = vadd.f32 %v267, 1.0
        %v291 = vadd.f32 %v269, 1.0
        %v292 = vadd.f32 %v271, 1.0
        %v293 = vadd.f32 %v273, 1.0
        %v294 = vadd.f32 %v275, 1.0
        %v295 = vadd.f32 %v277, 1.0
        %v296 = vadd.f32 %v279, 1.0
        %v297 = vadd.f32 %v281, 1.0
        %v298 = vrcp.pop %v282
        %v299 = vmul.f32 1.0, %v298
        %v300 = vrcp.pop %v283
        %v301 = vmul.f32 1.0, %v300
        %v302 = vrcp.pop %v284
        %v303 = vmul.f32 1.0, %v302
        %v304 = vrcp.pop %v285
        %v305 = vmul.f32 1.0, %v304
        %v306 = vrcp.pop %v286
        %v307 = vmul.f32 1.0, %v306
        %v308 = vrcp.pop %v287
        %v309 = vmul.f32 1.0, %v308
        %v310 = vrcp.pop %v288
        %v311 = vmul.f32 1.0, %v310
        %v312 = vrcp.pop %v289
        %v313 = vmul.f32 1.0, %v312
        %v314 = vrcp.pop %v290
        %v315 = vmul.f32 1.0, %v314
        %v316 = vrcp.pop %v291
        %v317 = vmul.f32 1.0, %v316
        %v318 = vrcp.pop %v292
        %v319 = vmul.f32 1.0, %v318
        %v320 = vrcp.pop %v293
        %v321 = vmul.f32 1.0, %v320
        %v322 = vrcp.pop %v294
        %v323 = vmul.f32 1.0, %v322
        %v324 = vrcp.pop %v295
        %v325 = vmul.f32 1.0, %v324
        %v326 = vrcp.pop %v296
        %v327 = vmul.f32 1.0, %v326
        %v328 = vrcp.pop %v297
        %v329 = vmul.f32 1.0, %v328
        %v330 = vmul.f32 %v218, %v299
        %v331 = vmul.f32 %v219, %v301
        %v332 = vmul.f32 %v220, %v303
        %v333 = vmul.f32 %v221, %v305
        %v334 = vmul.f32 %v222, %v307
        %v335 = vmul.f32 %v223, %v309
        %v336 = vmul.f32 %v224, %v311
        %v337 = vmul.f32 %v225, %v313
        %v338 = vmul.f32 %v226, %v315
        %v339 = vmul.f32 %v227, %v317
        %v340 = vmul.f32 %v228, %v319
        %v341 = vmul.f32 %v229, %v321
        %v342 = vmul.f32 %v230, %v323
        %v343 = vmul.f32 %v231, %v325
        %v344 = vmul.f32 %v232, %v327
        %v345 = vmul.f32 %v233, %v329
        %v346 = vld [vmem:[#allocation5] sm:$0xff]
        %v347 = vld [vmem:[#allocation5 + $0x8] sm:$0xff]
        %v348 = vld [vmem:[#allocation5 + $0x10] sm:$0xff]
        %v349 = vld [vmem:[#allocation5 + $0x18] sm:$0xff]
        %v350 = vld [vmem:[#allocation5 + $0x20] sm:$0xff]
        %v351 = vld [vmem:[#allocation5 + $0x28] sm:$0xff]
        %v352 = vld [vmem:[#allocation5 + $0x30] sm:$0xff]
        %v353 = vld [vmem:[#allocation5 + $0x38] sm:$0xff]
        %v354 = vld [vmem:[#allocation5 + $0x40] sm:$0xff]
        %v355 = vld [vmem:[#allocation5 + $0x48] sm:$0xff]
        %v356 = vld [vmem:[#allocation5 + $0x50] sm:$0xff]
        %v357 = vld [vmem:[#allocation5 + $0x58] sm:$0xff]
        %v358 = vld [vmem:[#allocation5 + $0x60] sm:$0xff]
        %v359 = vld [vmem:[#allocation5 + $0x68] sm:$0xff]
        %v360 = vld [vmem:[#allocation5 + $0x70] sm:$0xff]
        %v361 = vld [vmem:[#allocation5 + $0x78] sm:$0xff]
        %v362 = vld [vmem:[%s2] sm:$0x1]
        %v364 = vlaneseq
        %v365 = vshrl.u32 %v364, 7
        %v366 = vsub.s32 0, %v365
        %v367 = vrot.slane %v362, %v366
        %369 = vmatprep.subr.mxu0 0.0
        %370 = vmatpush1.msra.mxu0 %v346
        %371 = vmatprep.subr.mxu0 0.0
        %372 = vmatpush1.msra.mxu0 %v347
        %373 = vmatprep.subr.mxu0 0.0
        %374 = vmatpush1.msra.mxu0 %v348
        %375 = vmatprep.subr.mxu0 0.0
        %376 = vmatpush1.msra.mxu0 %v349
        %377 = vmatprep.subr.mxu0 0.0
        %378 = vmatpush1.msra.mxu0 %v350
        %379 = vmatprep.subr.mxu0 0.0
        %380 = vmatpush1.msra.mxu0 %v351
        %381 = vmatprep.subr.mxu0 0.0
        %382 = vmatpush1.msra.mxu0 %v352
        %383 = vmatprep.subr.mxu0 0.0
        %384 = vmatpush1.msra.mxu0 %v353
        %385 = vmatprep.subr.mxu0 0.0
        %386 = vmatpush1.msra.mxu0 %v354
        %387 = vmatprep.subr.mxu0 0.0
        %388 = vmatpush1.msra.mxu0 %v355
        %389 = vmatprep.subr.mxu0 0.0
        %390 = vmatpush1.msra.mxu0 %v356
        %391 = vmatprep.subr.mxu0 0.0
        %392 = vmatpush1.msra.mxu0 %v357
        %393 = vmatprep.subr.mxu0 0.0
        %394 = vmatpush1.msra.mxu0 %v358
        %395 = vmatprep.subr.mxu0 0.0
        %396 = vmatpush1.msra.mxu0 %v359
        %397 = vmatprep.subr.mxu0 0.0
        %398 = vmatpush1.msra.mxu0 %v360
        %399 = vmatprep.subr.mxu0 0.0
        %400 = vmatpush1.msra.mxu0 %v361
        %401 = vmatprep.subr.mxu0 0.0
        %402 = vmatpush1.msra.mxu0 0.0
        %403 = vmatprep.subr.mxu0 0.0
        %404 = vmatpush1.msra.mxu0 0.0
        %405 = vmatprep.subr.mxu0 0.0
        %406 = vmatpush1.msra.mxu0 0.0
        %407 = vmatprep.subr.mxu0 0.0
        %408 = vmatpush1.msra.mxu0 0.0
        %409 = vmatprep.subr.mxu0 0.0
        %410 = vmatpush1.msra.mxu0 0.0
        %411 = vmatprep.subr.mxu0 0.0
        %412 = vmatpush1.msra.mxu0 0.0
        %413 = vmatprep.subr.mxu0 0.0
        %414 = vmatpush1.msra.mxu0 0.0
        %415 = vmatprep.subr.mxu0 0.0
        %416 = vmatpush1.msra.mxu0 0.0
        %417 = vmatprep.subr.mxu0 0.0
        %418 = vmatpush1.msra.mxu0 0.0
        %419 = vmatprep.subr.mxu0 0.0
        %420 = vmatpush1.msra.mxu0 0.0
        %421 = vmatprep.subr.mxu0 0.0
        %422 = vmatpush1.msra.mxu0 0.0
        %423 = vmatprep.subr.mxu0 0.0
        %424 = vmatpush1.msra.mxu0 0.0
        %425 = vmatprep.subr.mxu0 0.0
        %426 = vmatpush1.msra.mxu0 0.0
        %427 = vmatprep.subr.mxu0 0.0
        %428 = vmatpush1.msra.mxu0 0.0
        %429 = vmatprep.subr.mxu0 0.0
        %430 = vmatpush1.msra.mxu0 0.0
        %431 = vmatprep.subr.mxu0 0.0
        %432 = vmatpush1.msra.mxu0 0.0
        %433 = vmatprep.mubr.f32.mxu0 0.0
        %434 = vmatmul.mubr.f32.gmra.mrb[0].mxu0 %v330
        %v435 = vpop.f32.mrb[0].mxu0
        %v436 = vadd.f32 %v367, %v435
        %v437 = vpop.f32.mrb[0].mxu0
        %438 = vmatprep.mubr.f32.mxu0 0.0
        %439 = vmatmul.mubr.f32.gmra.mrb[0].mxu0 %v331
        %v440 = vpop.f32.mrb[0].mxu0
        %v441 = vadd.f32 %v367, %v440
        %v442 = vpop.f32.mrb[0].mxu0
        %443 = vmatprep.mubr.f32.mxu0 0.0
        %444 = vmatmul.mubr.f32.gmra.mrb[0].mxu0 %v332
        %v445 = vpop.f32.mrb[0].mxu0
        %v446 = vadd.f32 %v367, %v445
        %v447 = vpop.f32.mrb[0].mxu0
        %448 = vmatprep.mubr.f32.mxu0 0.0
        %449 = vmatmul.mubr.f32.gmra.mrb[0].mxu0 %v333
        %v450 = vpop.f32.mrb[0].mxu0
        %v451 = vadd.f32 %v367, %v450
        %v452 = vpop.f32.mrb[0].mxu0
        %453 = vmatprep.mubr.f32.mxu0 0.0
        %454 = vmatmul.mubr.f32.gmra.mrb[0].mxu0 %v334
        %v455 = vpop.f32.mrb[0].mxu0
        %v456 = vadd.f32 %v367, %v455
        %v457 = vpop.f32.mrb[0].mxu0
        %458 = vmatprep.mubr.f32.mxu0 0.0
        %459 = vmatmul.mubr.f32.gmra.mrb[0].mxu0 %v335
        %v460 = vpop.f32.mrb[0].mxu0
        %v461 = vadd.f32 %v367, %v460
        %v462 = vpop.f32.mrb[0].mxu0
        %463 = vmatprep.mubr.f32.mxu0 0.0
        %464 = vmatmul.mubr.f32.gmra.mrb[0].mxu0 %v336
        %v465 = vpop.f32.mrb[0].mxu0
        %v466 = vadd.f32 %v367, %v465
        %v467 = vpop.f32.mrb[0].mxu0
        %468 = vmatprep.mubr.f32.mxu0 0.0
        %469 = vmatmul.mubr.f32.gmra.mrb[0].mxu0 %v337
        %v470 = vpop.f32.mrb[0].mxu0
        %v471 = vadd.f32 %v367, %v470
        %v472 = vpop.f32.mrb[0].mxu0
        %473 = vmatprep.mubr.f32.mxu0 0.0
        %474 = vmatmul.mubr.f32.gmra.mrb[0].mxu0 %v338
        %v475 = vpop.f32.mrb[0].mxu0
        %v476 = vadd.f32 %v367, %v475
        %v477 = vpop.f32.mrb[0].mxu0
        %478 = vmatprep.mubr.f32.mxu0 0.0
        %479 = vmatmul.mubr.f32.gmra.mrb[0].mxu0 %v339
        %v480 = vpop.f32.mrb[0].mxu0
        %v481 = vadd.f32 %v367, %v480
        %v482 = vpop.f32.mrb[0].mxu0
        %483 = vmatprep.mubr.f32.mxu0 0.0
        %484 = vmatmul.mubr.f32.gmra.mrb[0].mxu0 %v340
        %v485 = vpop.f32.mrb[0].mxu0
        %v486 = vadd.f32 %v367, %v485
        %v487 = vpop.f32.mrb[0].mxu0
        %488 = vmatprep.mubr.f32.mxu0 0.0
        %489 = vmatmul.mubr.f32.gmra.mrb[0].mxu0 %v341
        %v490 = vpop.f32.mrb[0].mxu0
        %v491 = vadd.f32 %v367, %v490
        %v492 = vpop.f32.mrb[0].mxu0
        %493 = vmatprep.mubr.f32.mxu0 0.0
        %494 = vmatmul.mubr.f32.gmra.mrb[0].mxu0 %v342
        %v495 = vpop.f32.mrb[0].mxu0
        %v496 = vadd.f32 %v367, %v495
        %v497 = vpop.f32.mrb[0].mxu0
        %498 = vmatprep.mubr.f32.mxu0 0.0
        %499 = vmatmul.mubr.f32.gmra.mrb[0].mxu0 %v343
        %v500 = vpop.f32.mrb[0].mxu0
        %v501 = vadd.f32 %v367, %v500
        %v502 = vpop.f32.mrb[0].mxu0
        %503 = vmatprep.mubr.f32.mxu0 0.0
        %504 = vmatmul.mubr.f32.gmra.mrb[0].mxu0 %v344
        %v505 = vpop.f32.mrb[0].mxu0
        %v506 = vadd.f32 %v367, %v505
        %v507 = vpop.f32.mrb[0].mxu0
        %508 = vmatprep.mubr.f32.mxu0 0.0
        %509 = vmatmul.mubr.f32.gmra.mrb[0].mxu0 %v345
        %v510 = vpop.f32.mrb[0].mxu0
        %v511 = vadd.f32 %v367, %v510
        %v512 = vpop.f32.mrb[0].mxu0
        %513 = vdwg.mxu0
        %v514 = vadd.f32 %v218, %v436
        %v515 = vadd.f32 %v219, %v441
        %v516 = vadd.f32 %v220, %v446
        %v517 = vadd.f32 %v221, %v451
        %v518 = vadd.f32 %v222, %v456
        %v519 = vadd.f32 %v223, %v461
        %v520 = vadd.f32 %v224, %v466
        %v521 = vadd.f32 %v225, %v471
        %v522 = vadd.f32 %v226, %v476
        %v523 = vadd.f32 %v227, %v481
        %v524 = vadd.f32 %v228, %v486
        %v525 = vadd.f32 %v229, %v491
        %v526 = vadd.f32 %v230, %v496
        %v527 = vadd.f32 %v231, %v501
        %v528 = vadd.f32 %v232, %v506
        %v529 = vadd.f32 %v233, %v511
        %530 = vst [vmem:[%s215] sm:$0xff] %v514
        %531 = vst [vmem:[%s215 + $0x8] sm:$0xff] %v515
        %532 = vst [vmem:[%s215 + $0x10] sm:$0xff] %v516
        %533 = vst [vmem:[%s215 + $0x18] sm:$0xff] %v517
        %534 = vst [vmem:[%s215 + $0x20] sm:$0xff] %v518
        %535 = vst [vmem:[%s215 + $0x28] sm:$0xff] %v519
        %536 = vst [vmem:[%s215 + $0x30] sm:$0xff] %v520
        %537 = vst [vmem:[%s215 + $0x38] sm:$0xff] %v521
        %538 = vst [vmem:[%s215 + $0x40] sm:$0xff] %v522
        %539 = vst [vmem:[%s215 + $0x48] sm:$0xff] %v523
        %540 = vst [vmem:[%s215 + $0x50] sm:$0xff] %v524
        %541 = vst [vmem:[%s215 + $0x58] sm:$0xff] %v525
        %542 = vst [vmem:[%s215 + $0x60] sm:$0xff] %v526
        %543 = vst [vmem:[%s215 + $0x68] sm:$0xff] %v527
        %544 = vst [vmem:[%s215 + $0x70] sm:$0xff] %v528
        %545 = vst [vmem:[%s215 + $0x78] sm:$0xff] %v529
        %s546 = sand.u32 %s109, 1
        %s547 = scalar_lea.sflag [#allocation4], %s546
        %s548 = sand.u32 %s109, 1
        %s549 = smul.addr %s548, 128
        %s550 = scalar_lea.vmem [#allocation7], %s549
        // Predicated region
        $region41: #{tpu_custom_call.1} parent=31 // pred_check
          %p551 = pneg %p119
        $region42: #{tpu_custom_call.1} parent=31 // pred_check_branch
          %553 = sbr.rel (%p551) target = $region44
        $region43: #{tpu_custom_call.1} parent=31 // pred_region
          %s554 = smul.u32 16, %s25
          %s556 = ssub.s32 2048, 2048
          %557 = vsyncadd %s547, %s556
          %s558 = smul.addr %s554, 128
          %s559 = scalar_lea.hbm %s3, %s558
          %s560 = sshll.u32 %s550, 4
          %s561 = int_to_ptr.vmem [resolvable:$true] %s560
          %566 = dma.vmem_to_hbm [thread:$0]  %s561, 2048, %s559, %s547, 128, 128, 8
        $region44: #{tpu_custom_call.1} parent=31 // pred_fallthru
          _
      $region32: #{tpu_custom_call.1} parent=5 // pred_fallthru
        _
      %p567 = scmp.le.s32.totalorder 2, %s16
      // Predicated region
      $region45: #{tpu_custom_call.1} parent=5 // pred_check
        %p568 = pneg %p567
      $region46: #{tpu_custom_call.1} parent=5 // pred_check_branch
        %570 = sbr.rel (%p568) target = $region48
      $region47: #{tpu_custom_call.1} parent=5 // pred_region
        %s571 = ssub.s32 %s16, 2
        // Predicated region
        $region49: #{tpu_custom_call.1} parent=47 // pred_check
          %p572 = pneg %p125
        $region50: #{tpu_custom_call.1} parent=47 // pred_check_branch
          %574 = sbr.rel (%p572) target = $region52
        $region51: #{tpu_custom_call.1} parent=47 // pred_region
          %s575 = sand.u32 %s110, 1
          %s576 = scalar_lea.sflag [#allocation4], %s575
          %s577 = sand.u32 %s110, 1
          %s578 = smul.addr %s577, 128
          %s579 = scalar_lea.vmem [#allocation7], %s578
          %580 = dma.done %s576, 2048
        $region52: #{tpu_custom_call.1} parent=47 // pred_fallthru
          _
      $region48: #{tpu_custom_call.1} parent=5 // pred_fallthru
        _
    $region6: #{tpu_custom_call.1} parent=1 // loop_footer
      %s20 = sadd.s32 1, %s16
    $region7: #{tpu_custom_call.1} parent=1 // loop_footer_branch
      %15 = sbr.rel target = $region3
    $region8: #{tpu_custom_call.1} parent=1 // loop_exit
      _
    %581 = vsyncpa [#allocation3], 1
    %s582 = scalar_lea.sflag [#allocation3], 1
    %583 = vsyncpa %s582, 1
    %584 = vsyncpa [#allocation6], 1
    %585 = vsyncpa [#allocation4], 1
    %s586 = scalar_lea.sflag [#allocation4], 1
    %587 = vsyncpa %s586, 1

</llo_original>
